<compile_context>
chip_gen: v6e
topology: v6e:2x2x1
jax: 0.10.0
libtpu: 0.0.40
codegen_flags: <defaults>
</compile_context>

<pallas_src>
import functools

import jax
import jax.numpy as jnp
from jax.experimental import pallas as pl
from jax.experimental.pallas import tpu as pltpu


def _round_up(x, m):
    return ((x + m - 1) // m) * m


def _cdiv(a, b):
    return (a + b - 1) // b


def _im2col_nkm(x, kh, kw, stride, pad):
    """x: (N, C, H, W) -> patches (N, K, OH*OW), K = C*KH*KW.

    K ordering is (c, kh, kw) (c-major), matching conv_w.reshape(OUP, C*KH*KW).
    N stays the leading axis so the final reshape is contiguous: no transpose
    of the large intermediate is materialized.
    """
    n, c, h, w = x.shape
    oh = (h + 2 * pad - kh) // stride + 1
    ow = (w + 2 * pad - kw) // stride + 1
    xp = jnp.pad(x, ((0, 0), (0, 0), (pad, pad), (pad, pad)))
    taps = []
    for i in range(kh):
        for j in range(kw):
            taps.append(
                xp[:, :, i: i + stride * (oh - 1) + 1: stride,
                      j: j + stride * (ow - 1) + 1: stride])   # (N, C, OH, OW)
    pat = jnp.stack(taps, axis=2)                  # (N, C, KH*KW, OH, OW)
    pat = pat.reshape(n, c * kh * kw, oh * ow)     # (N, K, OH*OW)  (contiguous)
    return pat, oh, ow


@functools.partial(
    jax.jit, static_argnames=("stride", "padding", "apply_batchnorm", "eps"))
def downsampler_forward(x, conv_w, bn_gamma, bn_beta, *, stride, padding,
                        apply_batchnorm=True, eps=1e-5):
    """x: (N, C, H, W) f32; conv_w: (OUP, C, KH, KW) f32 (PyTorch layout)."""
    n, c, _, _ = x.shape
    oup, _, kh, kw = conv_w.shape

    # ---- bf16 BEFORE im2col: the dominant materialized stream is half-width.
    patches, oh, ow = _im2col_nkm(
        x.astype(jnp.bfloat16), kh, kw, stride, padding)        # (N, K, Mimg) bf16
    k = c * kh * kw
    mimg = oh * ow
    m_total = n * mimg

    # ---- generation-aware VMEM budget / tile cap ----
    try:
        vmem_cap = int(pltpu.get_tpu_info().vmem_capacity_bytes)
    except Exception:
        vmem_cap = 64 << 20                        # conservative (v7x) default
    tm_cap = 4096 if vmem_cap >= (100 << 20) else 2048

    # Padding-minimal per-image tile size (multiple of 128, <= tm_cap).
    m128 = _round_up(mimg, 128)
    grid_t = _cdiv(m128, tm_cap)
    tm = _round_up(_cdiv(m128, grid_t), 128)
    mimg_pad = tm * grid_t

    patches = jnp.pad(patches, ((0, 0), (0, 0), (0, mimg_pad - mimg)))
    w2d = conv_w.reshape(oup, k).astype(jnp.bfloat16)           # (OUP, K) bf16
    gamma2d = bn_gamma.reshape(oup, 1).astype(jnp.float32)
    beta2d = bn_beta.reshape(oup, 1).astype(jnp.float32)

    inv_m = 1.0 / float(m_total)   # stats divide by the *true* element count;
                                   # zero-padded columns contribute 0 to sum/sumsq.

    # ---- resident conv scratch vs recompute fallback (no hard assert) ----
    pipe_bytes = (2 * k * tm * 2          # double-buffered patch tiles (bf16)
                  + 2 * oup * tm * 4      # double-buffered output tiles (f32)
                  + 2 * oup * k * 2       # weight tile (bf16)
                  + 8 * oup * 4           # gamma/beta + stats scratches
                  + (1 << 16))            # misc headroom
    conv_sc_bytes = oup * n * mimg_pad * 4
    budget = int(vmem_cap * 0.75)
    resident = (conv_sc_bytes + pipe_bytes) <= budget
    vmem_use = pipe_bytes + (conv_sc_bytes if resident else 0)
    vmem_limit = int(min(max(vmem_use + (4 << 20), 32 << 20),
                         int(vmem_cap * 0.9)))

    # ---- fused kernel: phase 0 = conv + stats, phase 1 = BN affine + LReLU ----
    def fused_kernel(w_ref, p_ref, g_ref, b_ref, o_ref, *scratch):
        if resident:
            conv_sc, sum_sc, sq_sc, scale_sc, shift_sc = scratch
        else:
            sum_sc, sq_sc, scale_sc, shift_sc = scratch

        phase = pl.program_id(0)
        ni = pl.program_id(1)
        ti = pl.program_id(2)

        @pl.when(phase == 0)
        def _conv_and_stats():
            @pl.when((ni == 0) & (ti == 0))
            def _():
                sum_sc[...] = jnp.zeros_like(sum_sc)
                sq_sc[...] = jnp.zeros_like(sq_sc)

            # (OUP, K) @ (K, tm) -> (OUP, tm), f32 accumulation on the MXU.
            y = jnp.dot(w_ref[...], p_ref[...],
                        preferred_element_type=jnp.float32)
            if resident:
                off = pl.multiple_of((ni * grid_t + ti) * tm, tm)
                conv_sc[:, pl.ds(off, tm)] = y
            sum_sc[...] += jnp.sum(y, axis=1, keepdims=True)
            sq_sc[...] += jnp.sum(y * y, axis=1, keepdims=True)

            @pl.when((ni == n - 1) & (ti == grid_t - 1))
            def _finalize_stats():
                if apply_batchnorm:
                    mean = sum_sc[...] * inv_m
                    # E[y^2] - E[y]^2 can cancel slightly negative; clamp.
                    var = jnp.maximum(sq_sc[...] * inv_m - mean * mean, 0.0)
                    scale = g_ref[...] * jax.lax.rsqrt(var + eps)
                    scale_sc[...] = scale
                    shift_sc[...] = b_ref[...] - mean * scale
                else:
                    scale_sc[...] = jnp.ones_like(scale_sc)
                    shift_sc[...] = jnp.zeros_like(shift_sc)

        @pl.when(phase == 1)
        def _bn_lrelu():
            if resident:
                off = pl.multiple_of((ni * grid_t + ti) * tm, tm)
                y = conv_sc[:, pl.ds(off, tm)]
            else:
                # Recompute fallback (v7x / big shapes): re-stream the bf16
                # patch tile and redo the matmul instead of holding the full
                # f32 conv output in VMEM.
                y = jnp.dot(w_ref[...], p_ref[...],
                            preferred_element_type=jnp.float32)
            y = y * scale_sc[...] + shift_sc[...]
            o_ref[...] = jnp.where(y >= 0.0, y, 0.2 * y)

    if resident:
        # Stream patch tiles in phase 0; hold the last tile (no re-DMA) in phase 1.
        def p_idx(p, i, t):
            return (i + (n - 1 - i) * p, 0, t + (grid_t - 1 - t) * p)
    else:
        # Recompute path: re-stream patch tiles in both phases.
        def p_idx(p, i, t):
            return (i, 0, t)

    def o_idx(p, i, t):
        # Output only advances (and writes back) during phase 1.
        return (i * p, 0, t * p)

    scratch_shapes = []
    if resident:
        scratch_shapes.append(pltpu.VMEM((oup, n * mimg_pad), jnp.float32))
    scratch_shapes += [pltpu.VMEM((oup, 1), jnp.float32),   # sum
                       pltpu.VMEM((oup, 1), jnp.float32),   # sum of squares
                       pltpu.VMEM((oup, 1), jnp.float32),   # BN scale
                       pltpu.VMEM((oup, 1), jnp.float32)]   # BN shift

    matmul_passes = 1 if resident else 2
    cost = pl.CostEstimate(
        flops=2 * oup * k * n * mimg_pad * matmul_passes,
        transcendentals=oup,
        bytes_accessed=(k * n * mimg_pad * 2 * matmul_passes   # patches (bf16)
                        + oup * k * 2                           # weights (bf16)
                        + n * oup * mimg_pad * 4                # output (f32)
                        + 2 * oup * 4))                         # gamma/beta

    out = pl.pallas_call(
        fused_kernel,
        out_shape=jax.ShapeDtypeStruct((n, oup, mimg_pad), jnp.float32),
        grid_spec=pltpu.PrefetchScalarGridSpec(
            num_scalar_prefetch=0,
            grid=(2, n, grid_t),
            in_specs=[
                # weights: resident, constant block
                pl.BlockSpec((oup, k), lambda p, i, t: (0, 0)),
                # patches (N, K, Mimg_pad): per-image lane-dense tiles
                pl.BlockSpec((pl.Squeezed(), k, tm), p_idx),
                pl.BlockSpec((oup, 1), lambda p, i, t: (0, 0)),   # gamma
                pl.BlockSpec((oup, 1), lambda p, i, t: (0, 0)),   # beta
            ],
            out_specs=pl.BlockSpec((pl.Squeezed(), oup, tm), o_idx),
            scratch_shapes=scratch_shapes),
        compiler_params=pltpu.CompilerParams(
            dimension_semantics=("arbitrary", "arbitrary", "arbitrary"),
            vmem_limit_bytes=vmem_limit),
        cost_estimate=cost,
    )(w2d, patches, gamma2d, beta2d)

    # (N, OUP, Mimg_pad) -> slice off lane padding -> (N, OUP, OH, OW).
    # No transpose: the kernel already emits NCHW-ordered data.
    return out[:, :, :mimg].reshape(n, oup, oh, ow)


def _reference(x, conv_w, bn_gamma, bn_beta, *, stride, padding,
               apply_batchnorm=True, eps=1e-5):
    """Pure-JAX f32 reference of the PyTorch module (training-mode BN)."""
    y = jax.lax.conv_general_dilated(
        x, conv_w, window_strides=(stride, stride),
        padding=[(padding, padding), (padding, padding)],
        dimension_numbers=("NCHW", "OIHW", "NCHW"))
    if apply_batchnorm:
        mean = jnp.mean(y, axis=(0, 2, 3), keepdims=True)
        var = jnp.mean((y - mean) ** 2, axis=(0, 2, 3), keepdims=True)
        y = (y - mean) * jax.lax.rsqrt(var + eps)
        y = y * bn_gamma.reshape(1, -1, 1, 1) + bn_beta.reshape(1, -1, 1, 1)
    return jnp.where(y >= 0.0, y, 0.2 * y)


if __name__ == "__main__":
    # Module config: Downsampler(inp=4, oup=8, size=4, stride=2, paddings=1)
    INP, OUP, SIZE, STRIDE, PAD = 4, 8, 4, 2, 1
    N, H, W = 2, 16, 16

    key = jax.random.PRNGKey(0)
    kx, kw = jax.random.split(key)

    x = jax.random.normal(kx, (N, INP, H, W), dtype=jnp.float32)
    # nn.init.normal_(conv.weight, 0.0, 0.02), bias=False
    conv_w = 0.02 * jax.random.normal(kw, (OUP, INP, SIZE, SIZE), dtype=jnp.float32)
    # BatchNorm2d default init: gamma=1, beta=0
    bn_gamma = jnp.ones((OUP,), jnp.float32)
    bn_beta = jnp.zeros((OUP,), jnp.float32)

    out = downsampler_forward(
        x, conv_w, bn_gamma, bn_beta,
        stride=STRIDE, padding=PAD, apply_batchnorm=True,
    )
    jax.block_until_ready(out)

    OH = (H + 2 * PAD - SIZE) // STRIDE + 1
    OW = (W + 2 * PAD - SIZE) // STRIDE + 1
    assert out.shape == (N, OUP, OH, OW)
    assert bool(jnp.all(jnp.isfinite(out)))

    ref = _reference(x, conv_w, bn_gamma, bn_beta,
                     stride=STRIDE, padding=PAD, apply_batchnorm=True)
    # bf16 matmul inputs vs f32 reference: allow a loose tolerance.
    assert bool(jnp.allclose(out, ref, atol=5e-2, rtol=5e-2)), (
        float(jnp.max(jnp.abs(out - ref))))
    print("KERNEL_OK")
</pallas_src>

<mosaic_0001>
module attributes {stable_mosaic.version = 11 : i64} {
  func.func @fused_kernel(%arg0: i32, %arg1: i32, %arg2: i32, %arg3: memref<8x64xbf16, #tpu.memory_space<vmem>>, %arg4: memref<1x64x128xbf16, #tpu.memory_space<vmem>>, %arg5: memref<8x1xf32, #tpu.memory_space<vmem>>, %arg6: memref<8x1xf32, #tpu.memory_space<vmem>>, %arg7: memref<1x8x128xf32, #tpu.memory_space<vmem>>, %arg8: memref<8x256xf32, #tpu.memory_space<vmem>>, %arg9: memref<8x1xf32, #tpu.memory_space<vmem>>, %arg10: memref<8x1xf32, #tpu.memory_space<vmem>>, %arg11: memref<8x1xf32, #tpu.memory_space<vmem>>, %arg12: memref<8x1xf32, #tpu.memory_space<vmem>>) attributes {dimension_semantics = [#tpu.dimension_semantics<arbitrary>, #tpu.dimension_semantics<arbitrary>, #tpu.dimension_semantics<arbitrary>], iteration_bounds = array<i64: 2, 2, 1>, scalar_prefetch = 0 : i64, scratch_operands = 5 : i64, tpu.core_type = #tpu.core_type<tc>, window_params = [{pipeline_mode = #tpu.pipeline_mode<synchronous>, transform_indices = @transform_0, window_bounds = array<i64: 8, 64>}, {transform_indices = @transform_1, window_bounds = array<i64: 1, 64, 128>}, {pipeline_mode = #tpu.pipeline_mode<synchronous>, transform_indices = @transform_2, window_bounds = array<i64: 8, 1>}, {pipeline_mode = #tpu.pipeline_mode<synchronous>, transform_indices = @transform_3, window_bounds = array<i64: 8, 1>}, {transform_indices = @transform_4, window_bounds = array<i64: 1, 8, 128>}]} {
    %c0_i32 = arith.constant 0 : i32
    %0 = arith.cmpi eq, %arg0, %c0_i32 : i32
    %1 = arith.extui %0 : i1 to i32
    %c0_i32_0 = arith.constant 0 : i32
    %2 = arith.cmpi ne, %1, %c0_i32_0 : i32
    scf.if %2 {
      %c0_i32_2 = arith.constant 0 : i32
      %6 = arith.cmpi eq, %arg1, %c0_i32_2 : i32
      %c0_i32_3 = arith.constant 0 : i32
      %7 = arith.cmpi eq, %arg2, %c0_i32_3 : i32
      %8 = arith.andi %6, %7 : i1
      %9 = arith.extui %8 : i1 to i32
      %c0_i32_4 = arith.constant 0 : i32
      %10 = arith.cmpi ne, %9, %c0_i32_4 : i32
      scf.if %10 {
        %cst_24 = arith.constant 0.000000e+00 : f32
        %37 = vector.broadcast %cst_24 : f32 to vector<8x1xf32>
        %c0_25 = arith.constant 0 : index
        %c0_26 = arith.constant 0 : index
        %38 = vector.load %arg9[%c0_25, %c0_26] : memref<8x1xf32, #tpu.memory_space<vmem>>, vector<8x1xf32>
        tpu.vector_store %arg9[%c0_25, %c0_26], %37 {strides = array<i32>} : memref<8x1xf32, #tpu.memory_space<vmem>>, vector<8x1xf32>,
        %cst_27 = arith.constant 0.000000e+00 : f32
        %39 = vector.broadcast %cst_27 : f32 to vector<8x1xf32>
        %c0_28 = arith.constant 0 : index
        %c0_29 = arith.constant 0 : index
        %40 = vector.load %arg10[%c0_28, %c0_29] : memref<8x1xf32, #tpu.memory_space<vmem>>, vector<8x1xf32>
        tpu.vector_store %arg10[%c0_28, %c0_29], %39 {strides = array<i32>} : memref<8x1xf32, #tpu.memory_space<vmem>>, vector<8x1xf32>,
      } else {
      }
      %c0 = arith.constant 0 : index
      %c0_5 = arith.constant 0 : index
      %11 = vector.load %arg3[%c0, %c0_5] : memref<8x64xbf16, #tpu.memory_space<vmem>>, vector<8x64xbf16>
      %c0_6 = arith.constant 0 : index
      %c0_7 = arith.constant 0 : index
      %c0_8 = arith.constant 0 : index
      %12 = vector.load %arg4[%c0_6, %c0_7, %c0_8] : memref<1x64x128xbf16, #tpu.memory_space<vmem>>, vector<1x64x128xbf16>
      %13 = vector.shape_cast %12 : vector<1x64x128xbf16> to vector<64x128xbf16>
      %cst = arith.constant dense<0.000000e+00> : vector<8x128xf32>
      %14 = tpu.matmul %11, %13, %cst {dimension_numbers = #tpu.dot_dimension_numbers<[1], [0], [0], [1], [0, 0, 1, 1], [], []>} : vector<8x64xbf16>, vector<64x128xbf16>, vector<8x128xf32> -> vector<8x128xf32>
      %c1_i32_9 = arith.constant 1 : i32
      %15 = arith.muli %arg1, %c1_i32_9 : i32
      %16 = arith.addi %15, %arg2 : i32
      %c128_i32 = arith.constant 128 : i32
      %17 = arith.muli %16, %c128_i32 : i32
      %18 = tpu.assume_multiple %17, 128 : i32
      %c0_10 = arith.constant 0 : index
      %19 = arith.index_cast %18 : i32 to index
      %20 = vector.load %arg8[%c0_10, %19] : memref<8x256xf32, #tpu.memory_space<vmem>>, vector<8x128xf32>
      tpu.vector_store %arg8[%c0_10, %19], %14 {strides = array<i32>} : memref<8x256xf32, #tpu.memory_space<vmem>>, vector<8x128xf32>,
      %c0_11 = arith.constant 0 : index
      %c0_12 = arith.constant 0 : index
      %21 = vector.load %arg9[%c0_11, %c0_12] : memref<8x1xf32, #tpu.memory_space<vmem>>, vector<8x1xf32>
      %cst_13 = arith.constant dense<0.000000e+00> : vector<8xf32>
      %22 = vector.multi_reduction <add>, %14, %cst_13 [1] : vector<8x128xf32> to vector<8xf32>
      %23 = vector.shape_cast %22 : vector<8xf32> to vector<8x1xf32>
      %24 = arith.addf %21, %23 : vector<8x1xf32>
      %c0_14 = arith.constant 0 : index
      %c0_15 = arith.constant 0 : index
      %25 = vector.load %arg9[%c0_14, %c0_15] : memref<8x1xf32, #tpu.memory_space<vmem>>, vector<8x1xf32>
      tpu.vector_store %arg9[%c0_14, %c0_15], %24 {strides = array<i32>} : memref<8x1xf32, #tpu.memory_space<vmem>>, vector<8x1xf32>,
      %c0_16 = arith.constant 0 : index
      %c0_17 = arith.constant 0 : index
      %26 = vector.load %arg10[%c0_16, %c0_17] : memref<8x1xf32, #tpu.memory_space<vmem>>, vector<8x1xf32>
      %27 = arith.mulf %14, %14 : vector<8x128xf32>
      %cst_18 = arith.constant dense<0.000000e+00> : vector<8xf32>
      %28 = vector.multi_reduction <add>, %27, %cst_18 [1] : vector<8x128xf32> to vector<8xf32>
      %29 = vector.shape_cast %28 : vector<8xf32> to vector<8x1xf32>
      %30 = arith.addf %26, %29 : vector<8x1xf32>
      %c0_19 = arith.constant 0 : index
      %c0_20 = arith.constant 0 : index
      %31 = vector.load %arg10[%c0_19, %c0_20] : memref<8x1xf32, #tpu.memory_space<vmem>>, vector<8x1xf32>
      tpu.vector_store %arg10[%c0_19, %c0_20], %30 {strides = array<i32>} : memref<8x1xf32, #tpu.memory_space<vmem>>, vector<8x1xf32>,
      %c1_i32_21 = arith.constant 1 : i32
      %32 = arith.cmpi eq, %arg1, %c1_i32_21 : i32
      %c0_i32_22 = arith.constant 0 : i32
      %33 = arith.cmpi eq, %arg2, %c0_i32_22 : i32
      %34 = arith.andi %32, %33 : i1
      %35 = arith.extui %34 : i1 to i32
      %c0_i32_23 = arith.constant 0 : i32
      %36 = arith.cmpi ne, %35, %c0_i32_23 : i32
      scf.if %36 {
        %c0_24 = arith.constant 0 : index
        %c0_25 = arith.constant 0 : index
        %37 = vector.load %arg9[%c0_24, %c0_25] : memref<8x1xf32, #tpu.memory_space<vmem>>, vector<8x1xf32>
        %cst_26 = arith.constant 7.812500e-03 : f32
        %38 = vector.broadcast %cst_26 : f32 to vector<8x1xf32>
        %39 = arith.mulf %37, %38 : vector<8x1xf32>
        %c0_27 = arith.constant 0 : index
        %c0_28 = arith.constant 0 : index
        %40 = vector.load %arg10[%c0_27, %c0_28] : memref<8x1xf32, #tpu.memory_space<vmem>>, vector<8x1xf32>
        %cst_29 = arith.constant 7.812500e-03 : f32
        %41 = vector.broadcast %cst_29 : f32 to vector<8x1xf32>
        %42 = arith.mulf %40, %41 : vector<8x1xf32>
        %43 = arith.mulf %39, %39 : vector<8x1xf32>
        %44 = arith.subf %42, %43 : vector<8x1xf32>
        %cst_30 = arith.constant 0.000000e+00 : f32
        %45 = vector.broadcast %cst_30 : f32 to vector<8x1xf32>
        %46 = arith.maximumf %44, %45 : vector<8x1xf32>
        %c0_31 = arith.constant 0 : index
        %c0_32 = arith.constant 0 : index
        %47 = vector.load %arg5[%c0_31, %c0_32] : memref<8x1xf32, #tpu.memory_space<vmem>>, vector<8x1xf32>
        %cst_33 = arith.constant 9.99999974E-6 : f32
        %48 = vector.broadcast %cst_33 : f32 to vector<8x1xf32>
        %49 = arith.addf %46, %48 : vector<8x1xf32>
        %50 = math.rsqrt %49 : vector<8x1xf32>
        %51 = arith.mulf %47, %50 : vector<8x1xf32>
        %c0_34 = arith.constant 0 : index
        %c0_35 = arith.constant 0 : index
        %52 = vector.load %arg11[%c0_34, %c0_35] : memref<8x1xf32, #tpu.memory_space<vmem>>, vector<8x1xf32>
        tpu.vector_store %arg11[%c0_34, %c0_35], %51 {strides = array<i32>} : memref<8x1xf32, #tpu.memory_space<vmem>>, vector<8x1xf32>,
        %c0_36 = arith.constant 0 : index
        %c0_37 = arith.constant 0 : index
        %53 = vector.load %arg6[%c0_36, %c0_37] : memref<8x1xf32, #tpu.memory_space<vmem>>, vector<8x1xf32>
        %54 = arith.mulf %39, %51 : vector<8x1xf32>
        %55 = arith.subf %53, %54 : vector<8x1xf32>
        %c0_38 = arith.constant 0 : index
        %c0_39 = arith.constant 0 : index
        %56 = vector.load %arg12[%c0_38, %c0_39] : memref<8x1xf32, #tpu.memory_space<vmem>>, vector<8x1xf32>
        tpu.vector_store %arg12[%c0_38, %c0_39], %55 {strides = array<i32>} : memref<8x1xf32, #tpu.memory_space<vmem>>, vector<8x1xf32>,
      } else {
      }
    } else {
    }
    %c1_i32 = arith.constant 1 : i32
    %3 = arith.cmpi eq, %arg0, %c1_i32 : i32
    %4 = arith.extui %3 : i1 to i32
    %c0_i32_1 = arith.constant 0 : i32
    %5 = arith.cmpi ne, %4, %c0_i32_1 : i32
    scf.if %5 {
      %c1_i32_2 = arith.constant 1 : i32
      %6 = arith.muli %arg1, %c1_i32_2 : i32
      %7 = arith.addi %6, %arg2 : i32
      %c128_i32 = arith.constant 128 : i32
      %8 = arith.muli %7, %c128_i32 : i32
      %9 = tpu.assume_multiple %8, 128 : i32
      %c0 = arith.constant 0 : index
      %10 = arith.index_cast %9 : i32 to index
      %11 = vector.load %arg8[%c0, %10] : memref<8x256xf32, #tpu.memory_space<vmem>>, vector<8x128xf32>
      %c0_3 = arith.constant 0 : index
      %c0_4 = arith.constant 0 : index
      %12 = vector.load %arg11[%c0_3, %c0_4] : memref<8x1xf32, #tpu.memory_space<vmem>>, vector<8x1xf32>
      %13 = vector.broadcast %12 : vector<8x1xf32> to vector<8x128xf32>
      %14 = arith.mulf %11, %13 : vector<8x128xf32>
      %c0_5 = arith.constant 0 : index
      %c0_6 = arith.constant 0 : index
      %15 = vector.load %arg12[%c0_5, %c0_6] : memref<8x1xf32, #tpu.memory_space<vmem>>, vector<8x1xf32>
      %16 = vector.broadcast %15 : vector<8x1xf32> to vector<8x128xf32>
      %17 = arith.addf %14, %16 : vector<8x128xf32>
      %cst = arith.constant 0.000000e+00 : f32
      %18 = vector.broadcast %cst : f32 to vector<8x128xf32>
      %19 = arith.cmpf oge, %17, %18 : vector<8x128xf32>
      %cst_7 = arith.constant 2.000000e-01 : f32
      %20 = vector.broadcast %cst_7 : f32 to vector<8x128xf32>
      %21 = arith.mulf %20, %17 : vector<8x128xf32>
      %22 = arith.select %19, %17, %21 : vector<8x128xi1>, vector<8x128xf32>
      %c0_8 = arith.constant 0 : index
      %c0_9 = arith.constant 0 : index
      %c0_10 = arith.constant 0 : index
      %23 = vector.load %arg7[%c0_8, %c0_9, %c0_10] : memref<1x8x128xf32, #tpu.memory_space<vmem>>, vector<1x8x128xf32>
      %24 = vector.shape_cast %23 : vector<1x8x128xf32> to vector<8x128xf32>
      %25 = vector.shape_cast %22 : vector<8x128xf32> to vector<1x8x128xf32>
      tpu.vector_store %arg7[%c0_8, %c0_9, %c0_10], %25 {strides = array<i32>} : memref<1x8x128xf32, #tpu.memory_space<vmem>>, vector<1x8x128xf32>,
    } else {
    }
    return
  }
  func.func @transform_0(%arg0: i32, %arg1: i32, %arg2: i32) -> (i32, i32) {
    %c0_i32 = arith.constant 0 : i32
    %c0_i32_0 = arith.constant 0 : i32
    %c0_i32_1 = arith.constant 0 : i32
    return %c0_i32, %c0_i32_0 : i32, i32
  }
  func.func @transform_1(%arg0: i32, %arg1: i32, %arg2: i32) -> (i32, i32, i32) {
    %c1_i32 = arith.constant 1 : i32
    %0 = arith.subi %c1_i32, %arg1 : i32
    %1 = arith.muli %0, %arg0 : i32
    %2 = arith.addi %arg1, %1 : i32
    %c0_i32 = arith.constant 0 : i32
    %3 = arith.subi %c0_i32, %arg2 : i32
    %4 = arith.muli %3, %arg0 : i32
    %5 = arith.addi %arg2, %4 : i32
    %c0_i32_0 = arith.constant 0 : i32
    %c0_i32_1 = arith.constant 0 : i32
    return %2, %c0_i32_0, %5 : i32, i32, i32
  }
  func.func @transform_2(%arg0: i32, %arg1: i32, %arg2: i32) -> (i32, i32) {
    %c0_i32 = arith.constant 0 : i32
    %c0_i32_0 = arith.constant 0 : i32
    %c0_i32_1 = arith.constant 0 : i32
    return %c0_i32, %c0_i32_0 : i32, i32
  }
  func.func @transform_3(%arg0: i32, %arg1: i32, %arg2: i32) -> (i32, i32) {
    %c0_i32 = arith.constant 0 : i32
    %c0_i32_0 = arith.constant 0 : i32
    %c0_i32_1 = arith.constant 0 : i32
    return %c0_i32, %c0_i32_0 : i32, i32
  }
  func.func @transform_4(%arg0: i32, %arg1: i32, %arg2: i32) -> (i32, i32, i32) {
    %0 = arith.muli %arg1, %arg0 : i32
    %1 = arith.muli %arg2, %arg0 : i32
    %c0_i32 = arith.constant 0 : i32
    %c0_i32_0 = arith.constant 0 : i32
    return %0, %c0_i32, %1 : i32, i32, i32
  }
}

</mosaic_0001>

<llo_original>
// kernel: downsampler_forward.1
$region0: #{downsampler_forward.1}
  #allocation0 [shape = 'u32[]', space=smem, size = 0x4, offset = 0x4, fixed_abs, tag = 'smem constant byte address 0x4 - core index']
  #allocation1 [shape = 'u32[144,128]{1,0:T(1,128)}', space=vmem, size = 0x12000, scoped, tag = 'internal scratch']
  #allocation2 [shape = 'f32[8,256]{1,0:T(8,128)}', space=vmem, size = 0x2000, scoped, tag = 'scratch operand']
  #allocation3 [shape = 'f32[8,1]{1,0:T(8,128)}', space=vmem, size = 0x1000, scoped, tag = 'scratch operand']
  #allocation4 [shape = 'f32[8,1]{1,0:T(8,128)}', space=vmem, size = 0x1000, scoped, tag = 'scratch operand']
  #allocation5 [shape = 'f32[8,1]{1,0:T(8,128)}', space=vmem, size = 0x1000, scoped, tag = 'scratch operand']
  #allocation6 [shape = 'f32[8,1]{1,0:T(8,128)}', space=vmem, size = 0x1000, scoped, tag = 'scratch operand']
  %s0 = inlined_call_operand.vmem [shape: bf16[8,64], index: 0, kind: input, shape index: {}]
  %s1 = inlined_call_operand.vmem [shape: bf16[2,64,128], index: 1, kind: input, shape index: {}]
  %s2 = inlined_call_operand.vmem [shape: f32[8,1], index: 2, kind: input, shape index: {}]
  %s3 = inlined_call_operand.vmem [shape: f32[8,1], index: 3, kind: input, shape index: {}]
  %s4 = inlined_call_operand.vmem [shape: f32[2,8,128], index: 4, kind: output, shape index: {}]
  %s5 = sld [smem:[#allocation0]]
  $region65: #{downsampler_forward.1} parent=0
    _
  %s7 = ssub.s32 1, %s5
  %s8 = scalar_select 0, %s7, %s5
  loop: start=0, step=1, limit=6
  $region2: #{downsampler_forward.1} parent=0 // loop_pre_header
    _
  $region3: #{downsampler_forward.1} parent=0 // loop_header
    %s10 = sphi 0, %s14
    %p11 = scmp.ge.s32.totalorder %s10, 6
    %s17 = sphi 0, %s36
    %s18 = sphi 0, %s32
    %s19 = sphi 0, %s28
    %s20 = sphi 0, %s17
    %s21 = sphi 0, %s18
    %s22 = sphi 0, %s19
    %s23 = sphi 0, %s20
    %s24 = sphi 0, %s21
    %s25 = sphi 0, %s22
    %s37 = sphi 0, %s37
    %s39 = sphi 0, %s37
    %s40 = sphi 0, %s39
    %s54 = sphi 0, %s40
    %s74 = sphi 0, %s76
    %s77 = sphi 0, %s74
    %s78 = sphi 0, %s77
    %s94 = sphi 0, %s78
    %s98 = sphi 0, %s98
    %s100 = sphi 0, %s98
    %s101 = sphi 0, %s100
    %s115 = sphi 0, %s101
    %s119 = sphi 0, %s119
    %s121 = sphi 0, %s119
    %s122 = sphi 0, %s121
    %s136 = sphi 0, %s122
    %s148 = sphi 0, %s150
    %s151 = sphi 0, %s148
    %s152 = sphi 0, %s151
    %s168 = sphi 0, %s152
  $region4: #{downsampler_forward.1} parent=0 // loop_header_branch
    %13 = sbr.rel (%p11) target = $region8
  $region5: #{downsampler_forward.1} parent=0 // loop_body
    %s15 = ssub.s32 %s10, 1
    %s16 = ssub.s32 %s10, 2
    %s26 = sadd.s32 1, %s19
    %p27 = scmp.ge.s32.totalorder %s26, 1
    %s28 = scalar_select %p27, 0, %s26
    %s29 = sadd.s32 1, %s18
    %s30 = scalar_select %p27, %s29, %s18
    %p31 = scmp.ge.s32.totalorder %s30, 2
    %s32 = scalar_select %p31, 0, %s30
    %s33 = sadd.s32 1, %s17
    %s34 = scalar_select %p31, %s33, %s17
    %p35 = scmp.ge.s32.totalorder %s34, 2
    %s36 = scalar_select %p35, 0, %s34
    %s38 = sadd.s32 %s37, 1
    %p41 = scmp.eq.s32.totalorder %s10, 3
    %p42 = scmp.ne.s32.totalorder %s37, %s39
    %p43 = scmp.eq.s32.totalorder %s10, 0
    %p44 = por %p42, %p43
    %p45 = scmp.ne.s32.totalorder %s37, %s39
    %p46 = scmp.eq.s32.totalorder %s15, 3
    %p47 = por %p45, %p46
    %p48 = scmp.ne.s32.totalorder %s39, %s40
    %p49 = scmp.eq.s32.totalorder %s15, 0
    %p50 = por %p48, %p49
    %p51 = scmp.ne.s32.totalorder %s39, %s40
    %p52 = scmp.eq.s32.totalorder %s16, 3
    %p53 = por %p51, %p52
    %p55 = scmp.ne.s32.totalorder %s40, %s54
    %p56 = scmp.eq.s32.totalorder %s16, 0
    %p57 = por %p55, %p56
    %s58 = ssub.s32 1, %s18
    %s59 = smul.u32 %s58, %s17
    %s60 = sadd.s32 %s18, %s59
    %s61 = ssub.s32 0, %s19
    %s62 = smul.u32 %s61, %s17
    %s63 = sadd.s32 %s19, %s62
    %s64 = ssub.s32 1, %s32
    %s65 = smul.u32 %s64, %s36
    %s66 = sadd.s32 %s32, %s65
    %s67 = ssub.s32 0, %s28
    %s68 = smul.u32 %s67, %s36
    %s69 = sadd.s32 %s28, %s68
    %s70 = ssub.s32 %s60, %s66
    %s71 = ssub.s32 %s63, %s69
    %s72 = sor.u32 %s70, %s71
    %p73 = scmp.eq.s32.totalorder %s72, 0
    %s75 = sadd.s32 %s74, 1
    %s76 = scalar_select %p73, %s74, %s75
    %p79 = pneg %p73
    %p80 = scmp.eq.s32.totalorder %s10, 3
    %p81 = por %p79, %p80
    %p82 = scmp.ne.s32.totalorder %s74, %s77
    %p83 = scmp.eq.s32.totalorder %s10, 0
    %p84 = por %p82, %p83
    %p85 = scmp.ne.s32.totalorder %s74, %s77
    %p86 = scmp.eq.s32.totalorder %s15, 3
    %p87 = por %p85, %p86
    %p88 = scmp.ne.s32.totalorder %s77, %s78
    %p89 = scmp.eq.s32.totalorder %s15, 0
    %p90 = por %p88, %p89
    %p91 = scmp.ne.s32.totalorder %s77, %s78
    %p92 = scmp.eq.s32.totalorder %s16, 3
    %p93 = por %p91, %p92
    %p95 = scmp.ne.s32.totalorder %s78, %s94
    %p96 = scmp.eq.s32.totalorder %s16, 0
    %p97 = por %p95, %p96
    %s99 = sadd.s32 %s98, 1
    %p102 = scmp.eq.s32.totalorder %s10, 3
    %p103 = scmp.ne.s32.totalorder %s98, %s100
    %p104 = scmp.eq.s32.totalorder %s10, 0
    %p105 = por %p103, %p104
    %p106 = scmp.ne.s32.totalorder %s98, %s100
    %p107 = scmp.eq.s32.totalorder %s15, 3
    %p108 = por %p106, %p107
    %p109 = scmp.ne.s32.totalorder %s100, %s101
    %p110 = scmp.eq.s32.totalorder %s15, 0
    %p111 = por %p109, %p110
    %p112 = scmp.ne.s32.totalorder %s100, %s101
    %p113 = scmp.eq.s32.totalorder %s16, 3
    %p114 = por %p112, %p113
    %p116 = scmp.ne.s32.totalorder %s101, %s115
    %p117 = scmp.eq.s32.totalorder %s16, 0
    %p118 = por %p116, %p117
    %s120 = sadd.s32 %s119, 1
    %p123 = scmp.eq.s32.totalorder %s10, 3
    %p124 = scmp.ne.s32.totalorder %s119, %s121
    %p125 = scmp.eq.s32.totalorder %s10, 0
    %p126 = por %p124, %p125
    %p127 = scmp.ne.s32.totalorder %s119, %s121
    %p128 = scmp.eq.s32.totalorder %s15, 3
    %p129 = por %p127, %p128
    %p130 = scmp.ne.s32.totalorder %s121, %s122
    %p131 = scmp.eq.s32.totalorder %s15, 0
    %p132 = por %p130, %p131
    %p133 = scmp.ne.s32.totalorder %s121, %s122
    %p134 = scmp.eq.s32.totalorder %s16, 3
    %p135 = por %p133, %p134
    %p137 = scmp.ne.s32.totalorder %s122, %s136
    %p138 = scmp.eq.s32.totalorder %s16, 0
    %p139 = por %p137, %p138
    %s140 = smul.u32 %s18, %s17
    %s141 = smul.u32 %s19, %s17
    %s142 = smul.u32 %s32, %s36
    %s143 = smul.u32 %s28, %s36
    %s144 = ssub.s32 %s140, %s142
    %s145 = ssub.s32 %s141, %s143
    %s146 = sor.u32 %s144, %s145
    %p147 = scmp.eq.s32.totalorder %s146, 0
    %s149 = sadd.s32 %s148, 1
    %s150 = scalar_select %p147, %s148, %s149
    %p153 = pneg %p147
    %p154 = scmp.eq.s32.totalorder %s10, 3
    %p155 = por %p153, %p154
    %p156 = scmp.ne.s32.totalorder %s148, %s151
    %p157 = scmp.eq.s32.totalorder %s10, 0
    %p158 = por %p156, %p157
    %p159 = scmp.ne.s32.totalorder %s148, %s151
    %p160 = scmp.eq.s32.totalorder %s15, 3
    %p161 = por %p159, %p160
    %p162 = scmp.ne.s32.totalorder %s151, %s152
    %p163 = scmp.eq.s32.totalorder %s15, 0
    %p164 = por %p162, %p163
    %p165 = scmp.ne.s32.totalorder %s151, %s152
    %p166 = scmp.eq.s32.totalorder %s16, 3
    %p167 = por %p165, %p166
    %p169 = scmp.ne.s32.totalorder %s152, %s168
    %p170 = scmp.eq.s32.totalorder %s16, 0
    %p171 = por %p169, %p170
    %p172 = scmp.le.s32.totalorder 1, %s10
    %p173 = scmp.lt.s32.totalorder %s10, 5
    %p174 = pnand %p172, %p173
    %p175 = pneg %p174
    // Predicated region
    $region9: #{downsampler_forward.1} parent=5 // pred_check
      _
    $region10: #{downsampler_forward.1} parent=5 // pred_check_branch
      %177 = sbr.rel (%p174) target = $region12
    $region11: #{downsampler_forward.1} parent=5 // pred_region
      %s178 = ssub.s32 %s10, 1
      // Predicated region
      $region13: #{downsampler_forward.1} parent=11 // pred_check
        %p179 = pneg %p50
      $region14: #{downsampler_forward.1} parent=11 // pred_check_branch
        %181 = sbr.rel (%p179) target = $region16
      $region15: #{downsampler_forward.1} parent=11 // pred_region
        _
      $region16: #{downsampler_forward.1} parent=11 // pred_fallthru
        _
      // Predicated region
      $region17: #{downsampler_forward.1} parent=11 // pred_check
        %p182 = pneg %p111
      $region18: #{downsampler_forward.1} parent=11 // pred_check_branch
        %184 = sbr.rel (%p182) target = $region20
      $region19: #{downsampler_forward.1} parent=11 // pred_region
        _
      $region20: #{downsampler_forward.1} parent=11 // pred_fallthru
        _
      // Predicated region
      $region21: #{downsampler_forward.1} parent=11 // pred_check
        %p185 = pneg %p132
      $region22: #{downsampler_forward.1} parent=11 // pred_check_branch
        %187 = sbr.rel (%p185) target = $region24
      $region23: #{downsampler_forward.1} parent=11 // pred_region
        _
      $region24: #{downsampler_forward.1} parent=11 // pred_fallthru
        _
    $region12: #{downsampler_forward.1} parent=5 // pred_fallthru
      _
    %p188 = scmp.lt.s32.totalorder %s10, 4
    // Predicated region
    $region25: #{downsampler_forward.1} parent=5 // pred_check
      %p189 = pneg %p188
    $region26: #{downsampler_forward.1} parent=5 // pred_check_branch
      %191 = sbr.rel (%p189) target = $region28
    $region27: #{downsampler_forward.1} parent=5 // pred_region
      // Predicated region
      $region29: #{downsampler_forward.1} parent=27 // pred_check
        %p192 = pneg %p84
      $region30: #{downsampler_forward.1} parent=27 // pred_check_branch
        %194 = sbr.rel (%p192) target = $region32
      $region31: #{downsampler_forward.1} parent=27 // pred_region
        %s195 = ssub.s32 1, %s18
        %s196 = smul.u32 %s195, %s17
        %s197 = sadd.s32 %s18, %s196
        %s198 = ssub.s32 0, %s19
        %s199 = smul.u32 %s198, %s17
        %s200 = sadd.s32 %s19, %s199
        %p201 = scmp.lt.s32.totalorder %s197, 1
        %s202 = scalar_select %p201, %s197, 1
        %p203 = scmp.lt.s32.totalorder %s200, 0
        %s204 = scalar_select %p203, %s200, 0
        %s205 = smul.addr %s202, 8
        %s206 = sadd.s32 %s204, %s205
        %s207 = smul.addr %s206, 4
        %s208 = scalar_lea.vmem %s1, %s207
        %s209 = ssub.s32 1, %s18
        %s210 = smul.u32 %s209, %s17
        %s211 = sadd.s32 %s18, %s210
        %s212 = ssub.s32 0, %s19
        %s213 = smul.u32 %s212, %s17
        %s214 = sadd.s32 %s19, %s213
      $region32: #{downsampler_forward.1} parent=27 // pred_fallthru
        _
    $region28: #{downsampler_forward.1} parent=5 // pred_fallthru
      _
    %p215 = scmp.le.s32.totalorder 1, %s10
    %p216 = scmp.lt.s32.totalorder %s10, 5
    %p217 = pnand %p215, %p216
    %p218 = pneg %p217
    // Predicated region
    $region33: #{downsampler_forward.1} parent=5 // pred_check
      _
    $region34: #{downsampler_forward.1} parent=5 // pred_check_branch
      %220 = sbr.rel (%p217) target = $region36
    $region35: #{downsampler_forward.1} parent=5 // pred_region
      %s221 = ssub.s32 %s10, 1
      %p222 = pneg %p50
      %p223 = pneg %p47
      %s224 = ssub.s32 1, %s21
      %s225 = smul.u32 %s224, %s20
      %s226 = sadd.s32 %s21, %s225
      %s227 = ssub.s32 0, %s22
      %s228 = smul.u32 %s227, %s20
      %s229 = sadd.s32 %s22, %s228
      %p230 = scmp.lt.s32.totalorder %s226, 1
      %s231 = scalar_select %p230, %s226, 1
      %p232 = scmp.lt.s32.totalorder %s229, 0
      %s233 = scalar_select %p232, %s229, 0
      %s234 = smul.addr %s231, 8
      %s235 = sadd.s32 %s233, %s234
      %s236 = smul.addr %s235, 4
      %s237 = scalar_lea.vmem %s1, %s236
      %p238 = pneg %p90
      %p239 = pneg %p87
      %p240 = pneg %p111
      %p241 = pneg %p108
      %p242 = pneg %p132
      %p243 = pneg %p129
      %p244 = pneg %p164
      %p245 = pneg %p161
      %s246 = smul.u32 %s21, %s20
      %s247 = smul.u32 %s22, %s20
      %p248 = scmp.lt.s32.totalorder %s246, 1
      %s249 = scalar_select %p248, %s246, 1
      %p250 = scmp.lt.s32.totalorder %s247, 0
      %s251 = scalar_select %p250, %s247, 0
      %s252 = sadd.s32 %s251, %s249
      %s253 = smul.addr %s252, 8
      %s254 = scalar_lea.vmem %s4, %s253
      %s255 = ssub.s32 1, %s21
      %s256 = smul.u32 %s255, %s20
      %s257 = sadd.s32 %s21, %s256
      %s258 = ssub.s32 0, %s22
      %s259 = smul.u32 %s258, %s20
      %s260 = sadd.s32 %s22, %s259
      %p261 = scmp.lt.s32.totalorder %s257, 1
      %s262 = scalar_select %p261, %s257, 1
      %p263 = scmp.lt.s32.totalorder %s260, 0
      %s264 = scalar_select %p263, %s260, 0
      %s265 = smul.addr %s262, 8
      %s266 = sadd.s32 %s264, %s265
      %s267 = smul.addr %s266, 4
      %s268 = scalar_lea.vmem %s1, %s267
      %s269 = ssub.s32 1, %s21
      %s270 = smul.u32 %s269, %s20
      %s271 = sadd.s32 %s21, %s270
      %s272 = ssub.s32 0, %s22
      %s273 = smul.u32 %s272, %s20
      %s274 = sadd.s32 %s22, %s273
      %s275 = smul.u32 %s21, %s20
      %s276 = smul.u32 %s22, %s20
      %p277 = scmp.lt.s32.totalorder %s275, 1
      %s278 = scalar_select %p277, %s275, 1
      %p279 = scmp.lt.s32.totalorder %s276, 0
      %s280 = scalar_select %p279, %s276, 0
      %s281 = sadd.s32 %s280, %s278
      %s282 = smul.addr %s281, 8
      %s283 = scalar_lea.vmem %s4, %s282
      %s284 = smul.u32 %s21, %s20
      %s285 = smul.u32 %s22, %s20
      %p287 = scmp.eq.s32.totalorder %s20, 0
      // Predicated region
      $region37: #{downsampler_forward.1} parent=35 // pred_check
        %p288 = pneg %p287
      $region38: #{downsampler_forward.1} parent=35 // pred_check_branch
        %290 = sbr.rel (%p288) target = $region40
      $region39: #{downsampler_forward.1} parent=35 // pred_region
        %p291 = scmp.eq.s32.totalorder %s21, 0
        %p292 = scmp.eq.s32.totalorder %s22, 0
        %p293 = pnand %p291, %p292
        %p294 = pneg %p293
        // Predicated region
        $region41: #{downsampler_forward.1} parent=39 // pred_check
          _
        $region42: #{downsampler_forward.1} parent=39 // pred_check_branch
          %296 = sbr.rel (%p293) target = $region44
        $region43: #{downsampler_forward.1} parent=39 // pred_region
          %vm297 = vcmask 7168
          %298 = vst.msk [vmem:[#allocation3] sm:$0xff] %vm297, 0.0
          %299 = vst.msk [vmem:[#allocation4] sm:$0xff] %vm297, 0.0
        $region44: #{downsampler_forward.1} parent=39 // pred_fallthru
          _
        %v300 = vld [vmem:[%s0] sm:$0xf]
        %v301 = vld [vmem:[%s268] sm:$0xf]
        %v302 = vld [vmem:[%s268 + $0x4] sm:$0xf]
        %v303 = vld [vmem:[%s268 + $0x8] sm:$0xf]
        %v304 = vld [vmem:[%s268 + $0xc] sm:$0xf]
        %v305 = vld [vmem:[%s268 + $0x10] sm:$0xf]
        %v306 = vld [vmem:[%s268 + $0x14] sm:$0xf]
        %v307 = vld [vmem:[%s268 + $0x18] sm:$0xf]
        %v308 = vld [vmem:[%s268 + $0x1c] sm:$0xf]
        %v317 = vunpack.c.l.b16 %v301
        %v318 = vunpack.c.l.b16 %v302
        %v319 = vunpack.c.l.b16 %v303
        %v320 = vunpack.c.l.b16 %v304
        %v321 = vunpack.c.l.b16 %v305
        %v322 = vunpack.c.l.b16 %v306
        %v323 = vunpack.c.l.b16 %v307
        %v324 = vunpack.c.l.b16 %v308
        %v325 = vpack.c.b16 %v318, %v317
        %v326 = vpack.c.b16 %v320, %v319
        %v327 = vpack.c.b16 %v322, %v321
        %v328 = vpack.c.b16 %v324, %v323
        %vm333 = vcmask 523264
        %v335 = vsel %vm333, %v300, 0
        %337 = vmatprep.subr.bf16.mxu0 0
        %338 = vmatpush1.bf16.msra.mxu0 0
        %339 = vmatprep.subr.bf16.mxu0 0
        %340 = vmatpush1.bf16.msra.mxu0 0
        %341 = vmatprep.subr.bf16.mxu0 0
        %342 = vmatpush1.bf16.msra.mxu0 0
        %343 = vmatprep.subr.bf16.mxu0 0
        %344 = vmatpush1.bf16.msra.mxu0 0
        %345 = vmatprep.subr.bf16.mxu0 0
        %346 = vmatpush1.bf16.msra.mxu0 %v328
        %347 = vmatprep.subr.bf16.mxu0 0
        %348 = vmatpush1.bf16.msra.mxu0 %v327
        %349 = vmatprep.subr.bf16.mxu0 0
        %350 = vmatpush1.bf16.msra.mxu0 %v326
        %351 = vmatprep.subr.bf16.mxu0 0
        %352 = vmatpush1.bf16.msra.mxu0 %v325
        %353 = vmatprep.subr.bf16.mxu0 0
        %354 = vmatpush2.bf16.msra.mxu0 0
        %355 = vmatprep.subr.bf16.mxu0 0
        %356 = vmatpush2.bf16.msra.mxu0 0
        %357 = vmatprep.subr.bf16.mxu0 0
        %358 = vmatpush2.bf16.msra.mxu0 0
        %359 = vmatprep.subr.bf16.mxu0 0
        %360 = vmatpush2.bf16.msra.mxu0 0
        %361 = vmatprep.subr.bf16.mxu0 0
        %362 = vmatpush2.bf16.msra.mxu0 0
        %363 = vmatprep.subr.bf16.mxu0 0
        %364 = vmatpush2.bf16.msra.mxu0 0
        %365 = vmatprep.subr.bf16.mxu0 0
        %366 = vmatpush2.bf16.msra.mxu0 0
        %367 = vmatprep.subr.bf16.mxu0 0
        %368 = vmatpush2.bf16.msra.mxu0 0
        %369 = vmatprep.mubr.bf16.mxu0 0
        %370 = vmatmul.mubr.bf16.gmra.mxu0 %v335
        %v371 = vpop.f32.mrf.mxu0
        %v372 = vadd.f32 0.0, %v371
        %v373 = vpop.f32.mrf.mxu0
        %v374 = vpop.f32.mrf.mxu0
        %v375 = vpop.f32.mrf.mxu0
        %376 = vdwg.mxu0
        %s377 = sadd.s32 %s21, %s22
        %s378 = smul.u32 %s377, 128
        %s379 = sshra.s32 %s378, 7
        %s380 = sand.u32 %s378, 127
        %s381 = smul.addr %s379, 8
        %s382 = scalar_lea.vmem [#allocation2], %s381
        %383 = vst [vmem:[%s382] sm:$0xff] %v372
        %v384 = vld [vmem:[#allocation3] sm:$0xff]
        %385 = vadd.xlane.f32.xlu0 %v372
        %v386 = vpop.xlane.xlu0 %385
        %v387 = vadd.f32 %v384, %v386
        %vm388 = vcmask 7168
        %389 = vst.msk [vmem:[#allocation3] sm:$0xff] %vm388, %v387
        %v390 = vld [vmem:[#allocation4] sm:$0xff]
        %v391 = vmul.f32 %v372, %v372
        %392 = vadd.xlane.f32.xlu0 %v391
        %v393 = vpop.xlane.xlu0 %392
        %v394 = vadd.f32 %v390, %v393
        %395 = vst.msk [vmem:[#allocation4] sm:$0xff] %vm388, %v394
        %p396 = scmp.eq.s32.totalorder %s21, 1
        %p397 = pnand %p396, %p292
        %p398 = pneg %p397
        // Predicated region
        $region45: #{downsampler_forward.1} parent=39 // pred_check
          _
        $region46: #{downsampler_forward.1} parent=39 // pred_check_branch
          %400 = sbr.rel (%p397) target = $region48
        $region47: #{downsampler_forward.1} parent=39 // pred_region
          %v401 = vld [vmem:[#allocation3] sm:$0xff]
          %v402 = vmul.f32 %v401, 0.0078125
          %v403 = vld [vmem:[#allocation4] sm:$0xff]
          %v404 = vmul.f32 %v403, 0.0078125
          %v405 = vmul.f32 %v402, %v402
          %v406 = vsub.f32 %v404, %v405
          %v407 = vmax.f32 %v406, 0.0
          %v408 = vld [vmem:[%s2] sm:$0xff]
          %v409 = vadd.f32 %v407, 1e-05
          %v410 = vrsqrt.pop %v409
          %v411 = vmul.f32 %v408, %v410
          %412 = vst.msk [vmem:[#allocation5] sm:$0xff] %vm388, %v411
          %v413 = vld [vmem:[%s3] sm:$0xff]
          %v414 = vmul.f32 %v402, %v411
          %v415 = vsub.f32 %v413, %v414
          %416 = vst.msk [vmem:[#allocation6] sm:$0xff] %vm388, %v415
        $region48: #{downsampler_forward.1} parent=39 // pred_fallthru
          _
      $region40: #{downsampler_forward.1} parent=35 // pred_fallthru
        _
      %p417 = scmp.eq.s32.totalorder %s20, 1
      // Predicated region
      $region49: #{downsampler_forward.1} parent=35 // pred_check
        %p418 = pneg %p417
      $region50: #{downsampler_forward.1} parent=35 // pred_check_branch
        %420 = sbr.rel (%p418) target = $region52
      $region51: #{downsampler_forward.1} parent=35 // pred_region
        %s421 = sadd.s32 %s21, %s22
        %s422 = smul.u32 %s421, 128
        %s423 = sshra.s32 %s422, 7
        %s424 = sand.u32 %s422, 127
        %s425 = smul.addr %s423, 8
        %s426 = scalar_lea.vmem [#allocation2], %s425
        %v427 = vld [vmem:[%s426] sm:$0xff]
        %v428 = vld [vmem:[#allocation5] sm:$0xff]
        %430 = vset.pattern.permute.xlu0 0
        %431 = vperm.xlu0 %430, %v428
        %v432 = vpop.permute.xlu0 %431
        %v434 = vmul.f32 %v427, %v432
        %v435 = vld [vmem:[#allocation6] sm:$0xff]
        %437 = vset.pattern.permute.xlu0 0
        %438 = vperm.xlu0 %437, %v435
        %v439 = vpop.permute.xlu0 %438
        %v441 = vadd.f32 %v434, %v439
        %vm442 = vcmp.ge.f32.partialorder %v441, 0.0
        %v443 = vmul.f32 %v441, 0.2
        %v444 = vsel %vm442, %v441, %v443
        %445 = vst [vmem:[%s283] sm:$0xff] %v444
      $region52: #{downsampler_forward.1} parent=35 // pred_fallthru
        _
      %s446 = smul.u32 %s21, %s20
      %s447 = smul.u32 %s22, %s20
      %p448 = scmp.lt.s32.totalorder %s446, 1
      %s449 = scalar_select %p448, %s446, 1
      %p450 = scmp.lt.s32.totalorder %s447, 0
      %s451 = scalar_select %p450, %s447, 0
      %s452 = sadd.s32 %s451, %s449
      %s453 = smul.addr %s452, 8
      %s454 = scalar_lea.vmem %s4, %s453
      // Predicated region
      $region53: #{downsampler_forward.1} parent=35 // pred_check
        %p455 = pneg %p161
      $region54: #{downsampler_forward.1} parent=35 // pred_check_branch
        %457 = sbr.rel (%p455) target = $region56
      $region55: #{downsampler_forward.1} parent=35 // pred_region
        %s458 = smul.u32 %s21, %s20
        %s459 = smul.u32 %s22, %s20
      $region56: #{downsampler_forward.1} parent=35 // pred_fallthru
        _
    $region36: #{downsampler_forward.1} parent=5 // pred_fallthru
      _
    %p460 = scmp.le.s32.totalorder 2, %s10
    // Predicated region
    $region57: #{downsampler_forward.1} parent=5 // pred_check
      %p461 = pneg %p460
    $region58: #{downsampler_forward.1} parent=5 // pred_check_branch
      %463 = sbr.rel (%p461) target = $region60
    $region59: #{downsampler_forward.1} parent=5 // pred_region
      %s464 = ssub.s32 %s10, 2
      // Predicated region
      $region61: #{downsampler_forward.1} parent=59 // pred_check
        %p465 = pneg %p167
      $region62: #{downsampler_forward.1} parent=59 // pred_check_branch
        %467 = sbr.rel (%p465) target = $region64
      $region63: #{downsampler_forward.1} parent=59 // pred_region
        %s468 = smul.u32 %s24, %s23
        %s469 = smul.u32 %s25, %s23
        %p470 = scmp.lt.s32.totalorder %s468, 1
        %s471 = scalar_select %p470, %s468, 1
        %p472 = scmp.lt.s32.totalorder %s469, 0
        %s473 = scalar_select %p472, %s469, 0
        %s474 = sadd.s32 %s473, %s471
        %s475 = smul.addr %s474, 8
        %s476 = scalar_lea.vmem %s4, %s475
      $region64: #{downsampler_forward.1} parent=59 // pred_fallthru
        _
    $region60: #{downsampler_forward.1} parent=5 // pred_fallthru
      _
  $region6: #{downsampler_forward.1} parent=0 // loop_footer
    %s14 = sadd.s32 1, %s10
  $region7: #{downsampler_forward.1} parent=0 // loop_footer_branch
    %9 = sbr.rel target = $region3
  $region8: #{downsampler_forward.1} parent=0 // loop_exit
    _

</llo_original>
